<compile_context>
chip_gen: v5e
topology: v5e:2x2
jax: 0.10.0
libtpu: 0.0.40
codegen_flags: <defaults>
</compile_context>

<pallas_src>
import math
from functools import partial

import numpy as np
import jax
import jax.numpy as jnp
from jax.experimental import pallas as pl
from jax.experimental.pallas import tpu as pltpu

COUT_PAD = 128  # lane-dense padded output-channel width


def _convt_gelu_kernel(xp_ref, w_ref, b_ref, o_ref, patch_ref):
    # xp_ref   : (B, Hp, Wp, Cin)     full-padded NHWC input, f32
    # w_ref    : (K*K*Cin, COUT_PAD)  flipped-kernel rows ordered (kh, kw, ic), f32
    # b_ref    : (1, COUT_PAD)        zero-padded bias, f32
    # o_ref    : (M_pad, COUT_PAD)    flattened lane-dense output, m = (b, oh, ow)
    # patch_ref: (M_pad, K*K*Cin)     scratch for the in-kernel im2col tile
    B, Hp, Wp, Cin = xp_ref.shape
    KKC, _ = w_ref.shape
    K = math.isqrt(KKC // Cin)
    Hout = Hp - K + 1
    Wout = Wp - K + 1

    # Zero the patch tile once (also covers the M..M_pad padding rows).
    patch_ref[...] = jnp.zeros_like(patch_ref)

    # In-kernel im2col: rows ordered (b, oh, ow), columns ordered (kh, kw, ic) to
    # match w_ref's row order. Pure static Ref slices -> offset vloads + small
    # masked stores; no value reshapes, no per-tap lane/sublane broadcasts.
    for b in range(B):
        for oh in range(Hout):
            r0 = (b * Hout + oh) * Wout
            for kh in range(K):
                for kw in range(K):
                    c0 = (kh * K + kw) * Cin
                    patch_ref[r0:r0 + Wout, c0:c0 + Cin] = \
                        xp_ref[b, oh + kh, kw:kw + Wout, :]

    # Transposed conv (stride=1, pad=0) == full-padded correlation with the
    # spatially flipped kernel: one small MXU matmul (f32 accumulate) + bias.
    v1 = jnp.dot(patch_ref[...], w_ref[...],
                 preferred_element_type=jnp.float32) + b_ref[...]

    # v9 = (0.5*v1) * (1 + tanh(0.7978845608 * (v1 + 0.044715*v1^3)))
    # written with one fewer vmul: v1 + 0.044715*v1^3 == v1*(1 + 0.044715*v1*v1)
    inner = v1 * (1.0 + 0.044715 * (v1 * v1))
    t = jnp.tanh(0.7978845608028654 * inner)      # EUP slot — effectively free
    o_ref[...] = (0.5 * v1) * (1.0 + t)


def prepare_convt_params(weight, bias, cout_pad=COUT_PAD):
    """One-time numpy weight/bias preprocessing — hoisted out of the jit path.

    weight: (Cin, Cout, K, K) (torch ConvTranspose2d layout); bias: (Cout,).
    Returns (wmat (K*K*Cin, cout_pad), bvec (1, cout_pad), K, Cout)."""
    weight = np.asarray(weight, dtype=np.float32)
    bias = np.asarray(bias, dtype=np.float32)
    Cin, Cout, K, _ = weight.shape
    wflip = weight[:, :, ::-1, ::-1]                                    # spatial flip
    wmat = np.transpose(wflip, (2, 3, 0, 1)).reshape(K * K * Cin, Cout)  # rows (kh,kw,ic)
    wmat = np.pad(wmat, ((0, 0), (0, cout_pad - Cout)))
    bvec = np.pad(bias, (0, cout_pad - Cout)).reshape(1, cout_pad)
    return jnp.asarray(wmat), jnp.asarray(bvec), K, Cout


@partial(jax.jit, static_argnames=("cout", "k"))
def convt_gelu(x_nchw, wmat, bvec, *, cout, k):
    """x_nchw: (B, Cin, H, W). Returns (B, cout, H+k-1, W+k-1) float32 (NCHW)."""
    B, Cin, H, W = x_nchw.shape
    Hout, Wout = H + k - 1, W + k - 1
    M = B * Hout * Wout
    M_pad = max(8, ((M + 7) // 8) * 8)

    # Only layout plumbing in the per-call path: NCHW->NHWC + full zero-pad
    # (fused by XLA), then slice/reshape/transpose back to NCHW after the kernel.
    x_nhwc = jnp.transpose(x_nchw, (0, 2, 3, 1)).astype(jnp.float32)
    xp = jnp.pad(x_nhwc, ((0, 0), (k - 1, k - 1), (k - 1, k - 1), (0, 0)))

    out2d = pl.pallas_call(
        _convt_gelu_kernel,
        out_shape=jax.ShapeDtypeStruct((M_pad, COUT_PAD), jnp.float32),
        in_specs=[
            pl.BlockSpec(memory_space=pltpu.VMEM),
            pl.BlockSpec(memory_space=pltpu.VMEM),
            pl.BlockSpec(memory_space=pltpu.VMEM),
        ],
        out_specs=pl.BlockSpec(memory_space=pltpu.VMEM),
        scratch_shapes=[pltpu.VMEM((M_pad, wmat.shape[0]), jnp.float32)],
    )(xp, wmat, bvec)

    out = out2d[:M, :cout].reshape(B, Hout, Wout, cout)
    return jnp.transpose(out, (0, 3, 1, 2))


def _reference_numpy(x, weight, bias):
    """Independent direct transposed-conv + GELU chain in numpy (float64)."""
    B, Cin, H, W = x.shape
    _, Cout, K, _ = weight.shape
    Hout, Wout = H + K - 1, W + K - 1
    v1 = np.tile(bias.reshape(1, Cout, 1, 1), (B, 1, Hout, Wout)).astype(np.float64)
    for n in range(B):
        for oc in range(Cout):
            for oh in range(Hout):
                for ow in range(Wout):
                    acc = 0.0
                    for ic in range(Cin):
                        for kh in range(K):
                            for kw in range(K):
                                ih, iw = oh - kh, ow - kw
                                if 0 <= ih < H and 0 <= iw < W:
                                    acc += x[n, ic, ih, iw] * weight[ic, oc, kh, kw]
                    v1[n, oc, oh, ow] += acc
    v2 = v1 * 0.5
    v3 = v1 * v1 * v1
    v4 = v3 * 0.044715
    v5 = v1 + v4
    v6 = v5 * 0.7978845608028654
    v7 = np.tanh(v6)
    v8 = v7 + 1.0
    return (v2 * v8).astype(np.float32)


if __name__ == "__main__":
    key = jax.random.PRNGKey(0)
    k_x, k_w, k_b = jax.random.split(key, 3)

    B, Cin, H, W = 2, 2, 4, 5   # Cin=2 as required by ConvTranspose2d(2, 19, 2)
    Cout, K = 19, 2

    # Quantize test data to bf16-representable f32 so any MXU input truncation is
    # exact and the f64 numpy reference matches the kernel to f32 roundoff.
    def _q(a):
        return jnp.asarray(a, jnp.bfloat16).astype(jnp.float32)

    x = _q(jax.random.normal(k_x, (B, Cin, H, W), jnp.float32))
    fan = Cin * K * K
    bound = 1.0 / np.sqrt(fan)
    weight = _q(jax.random.uniform(k_w, (Cin, Cout, K, K), jnp.float32, -bound, bound))
    bias = _q(jax.random.uniform(k_b, (Cout,), jnp.float32, -bound, bound))

    # One-time param preprocessing (outside jit; weights are static).
    wmat, bvec, Kp, Coutp = prepare_convt_params(weight, bias)

    out = jax.block_until_ready(convt_gelu(x, wmat, bvec, cout=Coutp, k=Kp))

    ref = _reference_numpy(np.asarray(x), np.asarray(weight), np.asarray(bias))
    np.testing.assert_allclose(np.asarray(out), ref, rtol=2e-5, atol=2e-5)

    print("KERNEL_OK")
</pallas_src>

<mosaic_0001>
module attributes {stable_mosaic.version = 11 : i64} {
  func.func @_convt_gelu_kernel(%arg0: memref<2x6x7x2xf32, #tpu.memory_space<vmem>>, %arg1: memref<8x128xf32, #tpu.memory_space<vmem>>, %arg2: memref<1x128xf32, #tpu.memory_space<vmem>>, %arg3: memref<64x128xf32, #tpu.memory_space<vmem>>, %arg4: memref<64x8xf32, #tpu.memory_space<vmem>>) attributes {dimension_semantics = [], scalar_prefetch = 0 : i64, scratch_operands = 1 : i64, tpu.core_type = #tpu.core_type<tc>} {
    %cst = arith.constant 0.000000e+00 : f32
    %0 = vector.broadcast %cst : f32 to vector<64x8xf32>
    %c0 = arith.constant 0 : index
    %c0_0 = arith.constant 0 : index
    %1 = vector.load %arg4[%c0, %c0_0] : memref<64x8xf32, #tpu.memory_space<vmem>>, vector<64x8xf32>
    tpu.vector_store %arg4[%c0, %c0_0], %0 {strides = array<i32>} : memref<64x8xf32, #tpu.memory_space<vmem>>, vector<64x8xf32>,
    %c0_1 = arith.constant 0 : index
    %c0_2 = arith.constant 0 : index
    %c0_3 = arith.constant 0 : index
    %c0_4 = arith.constant 0 : index
    %2 = vector.load %arg0[%c0_1, %c0_2, %c0_3, %c0_4] : memref<2x6x7x2xf32, #tpu.memory_space<vmem>>, vector<1x1x6x2xf32>
    %3 = vector.shape_cast %2 : vector<1x1x6x2xf32> to vector<6x2xf32>
    %c0_5 = arith.constant 0 : index
    %c0_6 = arith.constant 0 : index
    %4 = vector.load %arg4[%c0_5, %c0_6] : memref<64x8xf32, #tpu.memory_space<vmem>>, vector<6x2xf32>
    tpu.vector_store %arg4[%c0_5, %c0_6], %3 {strides = array<i32>} : memref<64x8xf32, #tpu.memory_space<vmem>>, vector<6x2xf32>,
    %c0_7 = arith.constant 0 : index
    %c0_8 = arith.constant 0 : index
    %c1 = arith.constant 1 : index
    %c0_9 = arith.constant 0 : index
    %5 = vector.load %arg0[%c0_7, %c0_8, %c1, %c0_9] : memref<2x6x7x2xf32, #tpu.memory_space<vmem>>, vector<1x1x6x2xf32>
    %6 = vector.shape_cast %5 : vector<1x1x6x2xf32> to vector<6x2xf32>
    %c0_10 = arith.constant 0 : index
    %c2 = arith.constant 2 : index
    %7 = vector.load %arg4[%c0_10, %c2] : memref<64x8xf32, #tpu.memory_space<vmem>>, vector<6x2xf32>
    tpu.vector_store %arg4[%c0_10, %c2], %6 {strides = array<i32>} : memref<64x8xf32, #tpu.memory_space<vmem>>, vector<6x2xf32>,
    %c0_11 = arith.constant 0 : index
    %c1_12 = arith.constant 1 : index
    %c0_13 = arith.constant 0 : index
    %c0_14 = arith.constant 0 : index
    %8 = vector.load %arg0[%c0_11, %c1_12, %c0_13, %c0_14] : memref<2x6x7x2xf32, #tpu.memory_space<vmem>>, vector<1x1x6x2xf32>
    %9 = vector.shape_cast %8 : vector<1x1x6x2xf32> to vector<6x2xf32>
    %c0_15 = arith.constant 0 : index
    %c4 = arith.constant 4 : index
    %10 = vector.load %arg4[%c0_15, %c4] : memref<64x8xf32, #tpu.memory_space<vmem>>, vector<6x2xf32>
    tpu.vector_store %arg4[%c0_15, %c4], %9 {strides = array<i32>} : memref<64x8xf32, #tpu.memory_space<vmem>>, vector<6x2xf32>,
    %c0_16 = arith.constant 0 : index
    %c1_17 = arith.constant 1 : index
    %c1_18 = arith.constant 1 : index
    %c0_19 = arith.constant 0 : index
    %11 = vector.load %arg0[%c0_16, %c1_17, %c1_18, %c0_19] : memref<2x6x7x2xf32, #tpu.memory_space<vmem>>, vector<1x1x6x2xf32>
    %12 = vector.shape_cast %11 : vector<1x1x6x2xf32> to vector<6x2xf32>
    %c0_20 = arith.constant 0 : index
    %c6 = arith.constant 6 : index
    %13 = vector.load %arg4[%c0_20, %c6] : memref<64x8xf32, #tpu.memory_space<vmem>>, vector<6x2xf32>
    tpu.vector_store %arg4[%c0_20, %c6], %12 {strides = array<i32>} : memref<64x8xf32, #tpu.memory_space<vmem>>, vector<6x2xf32>,
    %c0_21 = arith.constant 0 : index
    %c1_22 = arith.constant 1 : index
    %c0_23 = arith.constant 0 : index
    %c0_24 = arith.constant 0 : index
    %14 = vector.load %arg0[%c0_21, %c1_22, %c0_23, %c0_24] : memref<2x6x7x2xf32, #tpu.memory_space<vmem>>, vector<1x1x6x2xf32>
    %15 = vector.shape_cast %14 : vector<1x1x6x2xf32> to vector<6x2xf32>
    %c6_25 = arith.constant 6 : index
    %c0_26 = arith.constant 0 : index
    %16 = vector.load %arg4[%c6_25, %c0_26] : memref<64x8xf32, #tpu.memory_space<vmem>>, vector<6x2xf32>
    tpu.vector_store %arg4[%c6_25, %c0_26], %15 {strides = array<i32>} : memref<64x8xf32, #tpu.memory_space<vmem>>, vector<6x2xf32>,
    %c0_27 = arith.constant 0 : index
    %c1_28 = arith.constant 1 : index
    %c1_29 = arith.constant 1 : index
    %c0_30 = arith.constant 0 : index
    %17 = vector.load %arg0[%c0_27, %c1_28, %c1_29, %c0_30] : memref<2x6x7x2xf32, #tpu.memory_space<vmem>>, vector<1x1x6x2xf32>
    %18 = vector.shape_cast %17 : vector<1x1x6x2xf32> to vector<6x2xf32>
    %c6_31 = arith.constant 6 : index
    %c2_32 = arith.constant 2 : index
    %19 = vector.load %arg4[%c6_31, %c2_32] : memref<64x8xf32, #tpu.memory_space<vmem>>, vector<6x2xf32>
    tpu.vector_store %arg4[%c6_31, %c2_32], %18 {strides = array<i32>} : memref<64x8xf32, #tpu.memory_space<vmem>>, vector<6x2xf32>,
    %c0_33 = arith.constant 0 : index
    %c2_34 = arith.constant 2 : index
    %c0_35 = arith.constant 0 : index
    %c0_36 = arith.constant 0 : index
    %20 = vector.load %arg0[%c0_33, %c2_34, %c0_35, %c0_36] : memref<2x6x7x2xf32, #tpu.memory_space<vmem>>, vector<1x1x6x2xf32>
    %21 = vector.shape_cast %20 : vector<1x1x6x2xf32> to vector<6x2xf32>
    %c6_37 = arith.constant 6 : index
    %c4_38 = arith.constant 4 : index
    %22 = vector.load %arg4[%c6_37, %c4_38] : memref<64x8xf32, #tpu.memory_space<vmem>>, vector<6x2xf32>
    tpu.vector_store %arg4[%c6_37, %c4_38], %21 {strides = array<i32>} : memref<64x8xf32, #tpu.memory_space<vmem>>, vector<6x2xf32>,
    %c0_39 = arith.constant 0 : index
    %c2_40 = arith.constant 2 : index
    %c1_41 = arith.constant 1 : index
    %c0_42 = arith.constant 0 : index
    %23 = vector.load %arg0[%c0_39, %c2_40, %c1_41, %c0_42] : memref<2x6x7x2xf32, #tpu.memory_space<vmem>>, vector<1x1x6x2xf32>
    %24 = vector.shape_cast %23 : vector<1x1x6x2xf32> to vector<6x2xf32>
    %c6_43 = arith.constant 6 : index
    %c6_44 = arith.constant 6 : index
    %25 = vector.load %arg4[%c6_43, %c6_44] : memref<64x8xf32, #tpu.memory_space<vmem>>, vector<6x2xf32>
    tpu.vector_store %arg4[%c6_43, %c6_44], %24 {strides = array<i32>} : memref<64x8xf32, #tpu.memory_space<vmem>>, vector<6x2xf32>,
    %c0_45 = arith.constant 0 : index
    %c2_46 = arith.constant 2 : index
    %c0_47 = arith.constant 0 : index
    %c0_48 = arith.constant 0 : index
    %26 = vector.load %arg0[%c0_45, %c2_46, %c0_47, %c0_48] : memref<2x6x7x2xf32, #tpu.memory_space<vmem>>, vector<1x1x6x2xf32>
    %27 = vector.shape_cast %26 : vector<1x1x6x2xf32> to vector<6x2xf32>
    %c12 = arith.constant 12 : index
    %c0_49 = arith.constant 0 : index
    %28 = vector.load %arg4[%c12, %c0_49] : memref<64x8xf32, #tpu.memory_space<vmem>>, vector<6x2xf32>
    tpu.vector_store %arg4[%c12, %c0_49], %27 {strides = array<i32>} : memref<64x8xf32, #tpu.memory_space<vmem>>, vector<6x2xf32>,
    %c0_50 = arith.constant 0 : index
    %c2_51 = arith.constant 2 : index
    %c1_52 = arith.constant 1 : index
    %c0_53 = arith.constant 0 : index
    %29 = vector.load %arg0[%c0_50, %c2_51, %c1_52, %c0_53] : memref<2x6x7x2xf32, #tpu.memory_space<vmem>>, vector<1x1x6x2xf32>
    %30 = vector.shape_cast %29 : vector<1x1x6x2xf32> to vector<6x2xf32>
    %c12_54 = arith.constant 12 : index
    %c2_55 = arith.constant 2 : index
    %31 = vector.load %arg4[%c12_54, %c2_55] : memref<64x8xf32, #tpu.memory_space<vmem>>, vector<6x2xf32>
    tpu.vector_store %arg4[%c12_54, %c2_55], %30 {strides = array<i32>} : memref<64x8xf32, #tpu.memory_space<vmem>>, vector<6x2xf32>,
    %c0_56 = arith.constant 0 : index
    %c3 = arith.constant 3 : index
    %c0_57 = arith.constant 0 : index
    %c0_58 = arith.constant 0 : index
    %32 = vector.load %arg0[%c0_56, %c3, %c0_57, %c0_58] : memref<2x6x7x2xf32, #tpu.memory_space<vmem>>, vector<1x1x6x2xf32>
    %33 = vector.shape_cast %32 : vector<1x1x6x2xf32> to vector<6x2xf32>
    %c12_59 = arith.constant 12 : index
    %c4_60 = arith.constant 4 : index
    %34 = vector.load %arg4[%c12_59, %c4_60] : memref<64x8xf32, #tpu.memory_space<vmem>>, vector<6x2xf32>
    tpu.vector_store %arg4[%c12_59, %c4_60], %33 {strides = array<i32>} : memref<64x8xf32, #tpu.memory_space<vmem>>, vector<6x2xf32>,
    %c0_61 = arith.constant 0 : index
    %c3_62 = arith.constant 3 : index
    %c1_63 = arith.constant 1 : index
    %c0_64 = arith.constant 0 : index
    %35 = vector.load %arg0[%c0_61, %c3_62, %c1_63, %c0_64] : memref<2x6x7x2xf32, #tpu.memory_space<vmem>>, vector<1x1x6x2xf32>
    %36 = vector.shape_cast %35 : vector<1x1x6x2xf32> to vector<6x2xf32>
    %c12_65 = arith.constant 12 : index
    %c6_66 = arith.constant 6 : index
    %37 = vector.load %arg4[%c12_65, %c6_66] : memref<64x8xf32, #tpu.memory_space<vmem>>, vector<6x2xf32>
    tpu.vector_store %arg4[%c12_65, %c6_66], %36 {strides = array<i32>} : memref<64x8xf32, #tpu.memory_space<vmem>>, vector<6x2xf32>,
    %c0_67 = arith.constant 0 : index
    %c3_68 = arith.constant 3 : index
    %c0_69 = arith.constant 0 : index
    %c0_70 = arith.constant 0 : index
    %38 = vector.load %arg0[%c0_67, %c3_68, %c0_69, %c0_70] : memref<2x6x7x2xf32, #tpu.memory_space<vmem>>, vector<1x1x6x2xf32>
    %39 = vector.shape_cast %38 : vector<1x1x6x2xf32> to vector<6x2xf32>
    %c18 = arith.constant 18 : index
    %c0_71 = arith.constant 0 : index
    %40 = vector.load %arg4[%c18, %c0_71] : memref<64x8xf32, #tpu.memory_space<vmem>>, vector<6x2xf32>
    tpu.vector_store %arg4[%c18, %c0_71], %39 {strides = array<i32>} : memref<64x8xf32, #tpu.memory_space<vmem>>, vector<6x2xf32>,
    %c0_72 = arith.constant 0 : index
    %c3_73 = arith.constant 3 : index
    %c1_74 = arith.constant 1 : index
    %c0_75 = arith.constant 0 : index
    %41 = vector.load %arg0[%c0_72, %c3_73, %c1_74, %c0_75] : memref<2x6x7x2xf32, #tpu.memory_space<vmem>>, vector<1x1x6x2xf32>
    %42 = vector.shape_cast %41 : vector<1x1x6x2xf32> to vector<6x2xf32>
    %c18_76 = arith.constant 18 : index
    %c2_77 = arith.constant 2 : index
    %43 = vector.load %arg4[%c18_76, %c2_77] : memref<64x8xf32, #tpu.memory_space<vmem>>, vector<6x2xf32>
    tpu.vector_store %arg4[%c18_76, %c2_77], %42 {strides = array<i32>} : memref<64x8xf32, #tpu.memory_space<vmem>>, vector<6x2xf32>,
    %c0_78 = arith.constant 0 : index
    %c4_79 = arith.constant 4 : index
    %c0_80 = arith.constant 0 : index
    %c0_81 = arith.constant 0 : index
    %44 = vector.load %arg0[%c0_78, %c4_79, %c0_80, %c0_81] : memref<2x6x7x2xf32, #tpu.memory_space<vmem>>, vector<1x1x6x2xf32>
    %45 = vector.shape_cast %44 : vector<1x1x6x2xf32> to vector<6x2xf32>
    %c18_82 = arith.constant 18 : index
    %c4_83 = arith.constant 4 : index
    %46 = vector.load %arg4[%c18_82, %c4_83] : memref<64x8xf32, #tpu.memory_space<vmem>>, vector<6x2xf32>
    tpu.vector_store %arg4[%c18_82, %c4_83], %45 {strides = array<i32>} : memref<64x8xf32, #tpu.memory_space<vmem>>, vector<6x2xf32>,
    %c0_84 = arith.constant 0 : index
    %c4_85 = arith.constant 4 : index
    %c1_86 = arith.constant 1 : index
    %c0_87 = arith.constant 0 : index
    %47 = vector.load %arg0[%c0_84, %c4_85, %c1_86, %c0_87] : memref<2x6x7x2xf32, #tpu.memory_space<vmem>>, vector<1x1x6x2xf32>
    %48 = vector.shape_cast %47 : vector<1x1x6x2xf32> to vector<6x2xf32>
    %c18_88 = arith.constant 18 : index
    %c6_89 = arith.constant 6 : index
    %49 = vector.load %arg4[%c18_88, %c6_89] : memref<64x8xf32, #tpu.memory_space<vmem>>, vector<6x2xf32>
    tpu.vector_store %arg4[%c18_88, %c6_89], %48 {strides = array<i32>} : memref<64x8xf32, #tpu.memory_space<vmem>>, vector<6x2xf32>,
    %c0_90 = arith.constant 0 : index
    %c4_91 = arith.constant 4 : index
    %c0_92 = arith.constant 0 : index
    %c0_93 = arith.constant 0 : index
    %50 = vector.load %arg0[%c0_90, %c4_91, %c0_92, %c0_93] : memref<2x6x7x2xf32, #tpu.memory_space<vmem>>, vector<1x1x6x2xf32>
    %51 = vector.shape_cast %50 : vector<1x1x6x2xf32> to vector<6x2xf32>
    %c24 = arith.constant 24 : index
    %c0_94 = arith.constant 0 : index
    %52 = vector.load %arg4[%c24, %c0_94] : memref<64x8xf32, #tpu.memory_space<vmem>>, vector<6x2xf32>
    tpu.vector_store %arg4[%c24, %c0_94], %51 {strides = array<i32>} : memref<64x8xf32, #tpu.memory_space<vmem>>, vector<6x2xf32>,
    %c0_95 = arith.constant 0 : index
    %c4_96 = arith.constant 4 : index
    %c1_97 = arith.constant 1 : index
    %c0_98 = arith.constant 0 : index
    %53 = vector.load %arg0[%c0_95, %c4_96, %c1_97, %c0_98] : memref<2x6x7x2xf32, #tpu.memory_space<vmem>>, vector<1x1x6x2xf32>
    %54 = vector.shape_cast %53 : vector<1x1x6x2xf32> to vector<6x2xf32>
    %c24_99 = arith.constant 24 : index
    %c2_100 = arith.constant 2 : index
    %55 = vector.load %arg4[%c24_99, %c2_100] : memref<64x8xf32, #tpu.memory_space<vmem>>, vector<6x2xf32>
    tpu.vector_store %arg4[%c24_99, %c2_100], %54 {strides = array<i32>} : memref<64x8xf32, #tpu.memory_space<vmem>>, vector<6x2xf32>,
    %c0_101 = arith.constant 0 : index
    %c5 = arith.constant 5 : index
    %c0_102 = arith.constant 0 : index
    %c0_103 = arith.constant 0 : index
    %56 = vector.load %arg0[%c0_101, %c5, %c0_102, %c0_103] : memref<2x6x7x2xf32, #tpu.memory_space<vmem>>, vector<1x1x6x2xf32>
    %57 = vector.shape_cast %56 : vector<1x1x6x2xf32> to vector<6x2xf32>
    %c24_104 = arith.constant 24 : index
    %c4_105 = arith.constant 4 : index
    %58 = vector.load %arg4[%c24_104, %c4_105] : memref<64x8xf32, #tpu.memory_space<vmem>>, vector<6x2xf32>
    tpu.vector_store %arg4[%c24_104, %c4_105], %57 {strides = array<i32>} : memref<64x8xf32, #tpu.memory_space<vmem>>, vector<6x2xf32>,
    %c0_106 = arith.constant 0 : index
    %c5_107 = arith.constant 5 : index
    %c1_108 = arith.constant 1 : index
    %c0_109 = arith.constant 0 : index
    %59 = vector.load %arg0[%c0_106, %c5_107, %c1_108, %c0_109] : memref<2x6x7x2xf32, #tpu.memory_space<vmem>>, vector<1x1x6x2xf32>
    %60 = vector.shape_cast %59 : vector<1x1x6x2xf32> to vector<6x2xf32>
    %c24_110 = arith.constant 24 : index
    %c6_111 = arith.constant 6 : index
    %61 = vector.load %arg4[%c24_110, %c6_111] : memref<64x8xf32, #tpu.memory_space<vmem>>, vector<6x2xf32>
    tpu.vector_store %arg4[%c24_110, %c6_111], %60 {strides = array<i32>} : memref<64x8xf32, #tpu.memory_space<vmem>>, vector<6x2xf32>,
    %c1_112 = arith.constant 1 : index
    %c0_113 = arith.constant 0 : index
    %c0_114 = arith.constant 0 : index
    %c0_115 = arith.constant 0 : index
    %62 = vector.load %arg0[%c1_112, %c0_113, %c0_114, %c0_115] : memref<2x6x7x2xf32, #tpu.memory_space<vmem>>, vector<1x1x6x2xf32>
    %63 = vector.shape_cast %62 : vector<1x1x6x2xf32> to vector<6x2xf32>
    %c30 = arith.constant 30 : index
    %c0_116 = arith.constant 0 : index
    %64 = vector.load %arg4[%c30, %c0_116] : memref<64x8xf32, #tpu.memory_space<vmem>>, vector<6x2xf32>
    tpu.vector_store %arg4[%c30, %c0_116], %63 {strides = array<i32>} : memref<64x8xf32, #tpu.memory_space<vmem>>, vector<6x2xf32>,
    %c1_117 = arith.constant 1 : index
    %c0_118 = arith.constant 0 : index
    %c1_119 = arith.constant 1 : index
    %c0_120 = arith.constant 0 : index
    %65 = vector.load %arg0[%c1_117, %c0_118, %c1_119, %c0_120] : memref<2x6x7x2xf32, #tpu.memory_space<vmem>>, vector<1x1x6x2xf32>
    %66 = vector.shape_cast %65 : vector<1x1x6x2xf32> to vector<6x2xf32>
    %c30_121 = arith.constant 30 : index
    %c2_122 = arith.constant 2 : index
    %67 = vector.load %arg4[%c30_121, %c2_122] : memref<64x8xf32, #tpu.memory_space<vmem>>, vector<6x2xf32>
    tpu.vector_store %arg4[%c30_121, %c2_122], %66 {strides = array<i32>} : memref<64x8xf32, #tpu.memory_space<vmem>>, vector<6x2xf32>,
    %c1_123 = arith.constant 1 : index
    %c1_124 = arith.constant 1 : index
    %c0_125 = arith.constant 0 : index
    %c0_126 = arith.constant 0 : index
    %68 = vector.load %arg0[%c1_123, %c1_124, %c0_125, %c0_126] : memref<2x6x7x2xf32, #tpu.memory_space<vmem>>, vector<1x1x6x2xf32>
    %69 = vector.shape_cast %68 : vector<1x1x6x2xf32> to vector<6x2xf32>
    %c30_127 = arith.constant 30 : index
    %c4_128 = arith.constant 4 : index
    %70 = vector.load %arg4[%c30_127, %c4_128] : memref<64x8xf32, #tpu.memory_space<vmem>>, vector<6x2xf32>
    tpu.vector_store %arg4[%c30_127, %c4_128], %69 {strides = array<i32>} : memref<64x8xf32, #tpu.memory_space<vmem>>, vector<6x2xf32>,
    %c1_129 = arith.constant 1 : index
    %c1_130 = arith.constant 1 : index
    %c1_131 = arith.constant 1 : index
    %c0_132 = arith.constant 0 : index
    %71 = vector.load %arg0[%c1_129, %c1_130, %c1_131, %c0_132] : memref<2x6x7x2xf32, #tpu.memory_space<vmem>>, vector<1x1x6x2xf32>
    %72 = vector.shape_cast %71 : vector<1x1x6x2xf32> to vector<6x2xf32>
    %c30_133 = arith.constant 30 : index
    %c6_134 = arith.constant 6 : index
    %73 = vector.load %arg4[%c30_133, %c6_134] : memref<64x8xf32, #tpu.memory_space<vmem>>, vector<6x2xf32>
    tpu.vector_store %arg4[%c30_133, %c6_134], %72 {strides = array<i32>} : memref<64x8xf32, #tpu.memory_space<vmem>>, vector<6x2xf32>,
    %c1_135 = arith.constant 1 : index
    %c1_136 = arith.constant 1 : index
    %c0_137 = arith.constant 0 : index
    %c0_138 = arith.constant 0 : index
    %74 = vector.load %arg0[%c1_135, %c1_136, %c0_137, %c0_138] : memref<2x6x7x2xf32, #tpu.memory_space<vmem>>, vector<1x1x6x2xf32>
    %75 = vector.shape_cast %74 : vector<1x1x6x2xf32> to vector<6x2xf32>
    %c36 = arith.constant 36 : index
    %c0_139 = arith.constant 0 : index
    %76 = vector.load %arg4[%c36, %c0_139] : memref<64x8xf32, #tpu.memory_space<vmem>>, vector<6x2xf32>
    tpu.vector_store %arg4[%c36, %c0_139], %75 {strides = array<i32>} : memref<64x8xf32, #tpu.memory_space<vmem>>, vector<6x2xf32>,
    %c1_140 = arith.constant 1 : index
    %c1_141 = arith.constant 1 : index
    %c1_142 = arith.constant 1 : index
    %c0_143 = arith.constant 0 : index
    %77 = vector.load %arg0[%c1_140, %c1_141, %c1_142, %c0_143] : memref<2x6x7x2xf32, #tpu.memory_space<vmem>>, vector<1x1x6x2xf32>
    %78 = vector.shape_cast %77 : vector<1x1x6x2xf32> to vector<6x2xf32>
    %c36_144 = arith.constant 36 : index
    %c2_145 = arith.constant 2 : index
    %79 = vector.load %arg4[%c36_144, %c2_145] : memref<64x8xf32, #tpu.memory_space<vmem>>, vector<6x2xf32>
    tpu.vector_store %arg4[%c36_144, %c2_145], %78 {strides = array<i32>} : memref<64x8xf32, #tpu.memory_space<vmem>>, vector<6x2xf32>,
    %c1_146 = arith.constant 1 : index
    %c2_147 = arith.constant 2 : index
    %c0_148 = arith.constant 0 : index
    %c0_149 = arith.constant 0 : index
    %80 = vector.load %arg0[%c1_146, %c2_147, %c0_148, %c0_149] : memref<2x6x7x2xf32, #tpu.memory_space<vmem>>, vector<1x1x6x2xf32>
    %81 = vector.shape_cast %80 : vector<1x1x6x2xf32> to vector<6x2xf32>
    %c36_150 = arith.constant 36 : index
    %c4_151 = arith.constant 4 : index
    %82 = vector.load %arg4[%c36_150, %c4_151] : memref<64x8xf32, #tpu.memory_space<vmem>>, vector<6x2xf32>
    tpu.vector_store %arg4[%c36_150, %c4_151], %81 {strides = array<i32>} : memref<64x8xf32, #tpu.memory_space<vmem>>, vector<6x2xf32>,
    %c1_152 = arith.constant 1 : index
    %c2_153 = arith.constant 2 : index
    %c1_154 = arith.constant 1 : index
    %c0_155 = arith.constant 0 : index
    %83 = vector.load %arg0[%c1_152, %c2_153, %c1_154, %c0_155] : memref<2x6x7x2xf32, #tpu.memory_space<vmem>>, vector<1x1x6x2xf32>
    %84 = vector.shape_cast %83 : vector<1x1x6x2xf32> to vector<6x2xf32>
    %c36_156 = arith.constant 36 : index
    %c6_157 = arith.constant 6 : index
    %85 = vector.load %arg4[%c36_156, %c6_157] : memref<64x8xf32, #tpu.memory_space<vmem>>, vector<6x2xf32>
    tpu.vector_store %arg4[%c36_156, %c6_157], %84 {strides = array<i32>} : memref<64x8xf32, #tpu.memory_space<vmem>>, vector<6x2xf32>,
    %c1_158 = arith.constant 1 : index
    %c2_159 = arith.constant 2 : index
    %c0_160 = arith.constant 0 : index
    %c0_161 = arith.constant 0 : index
    %86 = vector.load %arg0[%c1_158, %c2_159, %c0_160, %c0_161] : memref<2x6x7x2xf32, #tpu.memory_space<vmem>>, vector<1x1x6x2xf32>
    %87 = vector.shape_cast %86 : vector<1x1x6x2xf32> to vector<6x2xf32>
    %c42 = arith.constant 42 : index
    %c0_162 = arith.constant 0 : index
    %88 = vector.load %arg4[%c42, %c0_162] : memref<64x8xf32, #tpu.memory_space<vmem>>, vector<6x2xf32>
    tpu.vector_store %arg4[%c42, %c0_162], %87 {strides = array<i32>} : memref<64x8xf32, #tpu.memory_space<vmem>>, vector<6x2xf32>,
    %c1_163 = arith.constant 1 : index
    %c2_164 = arith.constant 2 : index
    %c1_165 = arith.constant 1 : index
    %c0_166 = arith.constant 0 : index
    %89 = vector.load %arg0[%c1_163, %c2_164, %c1_165, %c0_166] : memref<2x6x7x2xf32, #tpu.memory_space<vmem>>, vector<1x1x6x2xf32>
    %90 = vector.shape_cast %89 : vector<1x1x6x2xf32> to vector<6x2xf32>
    %c42_167 = arith.constant 42 : index
    %c2_168 = arith.constant 2 : index
    %91 = vector.load %arg4[%c42_167, %c2_168] : memref<64x8xf32, #tpu.memory_space<vmem>>, vector<6x2xf32>
    tpu.vector_store %arg4[%c42_167, %c2_168], %90 {strides = array<i32>} : memref<64x8xf32, #tpu.memory_space<vmem>>, vector<6x2xf32>,
    %c1_169 = arith.constant 1 : index
    %c3_170 = arith.constant 3 : index
    %c0_171 = arith.constant 0 : index
    %c0_172 = arith.constant 0 : index
    %92 = vector.load %arg0[%c1_169, %c3_170, %c0_171, %c0_172] : memref<2x6x7x2xf32, #tpu.memory_space<vmem>>, vector<1x1x6x2xf32>
    %93 = vector.shape_cast %92 : vector<1x1x6x2xf32> to vector<6x2xf32>
    %c42_173 = arith.constant 42 : index
    %c4_174 = arith.constant 4 : index
    %94 = vector.load %arg4[%c42_173, %c4_174] : memref<64x8xf32, #tpu.memory_space<vmem>>, vector<6x2xf32>
    tpu.vector_store %arg4[%c42_173, %c4_174], %93 {strides = array<i32>} : memref<64x8xf32, #tpu.memory_space<vmem>>, vector<6x2xf32>,
    %c1_175 = arith.constant 1 : index
    %c3_176 = arith.constant 3 : index
    %c1_177 = arith.constant 1 : index
    %c0_178 = arith.constant 0 : index
    %95 = vector.load %arg0[%c1_175, %c3_176, %c1_177, %c0_178] : memref<2x6x7x2xf32, #tpu.memory_space<vmem>>, vector<1x1x6x2xf32>
    %96 = vector.shape_cast %95 : vector<1x1x6x2xf32> to vector<6x2xf32>
    %c42_179 = arith.constant 42 : index
    %c6_180 = arith.constant 6 : index
    %97 = vector.load %arg4[%c42_179, %c6_180] : memref<64x8xf32, #tpu.memory_space<vmem>>, vector<6x2xf32>
    tpu.vector_store %arg4[%c42_179, %c6_180], %96 {strides = array<i32>} : memref<64x8xf32, #tpu.memory_space<vmem>>, vector<6x2xf32>,
    %c1_181 = arith.constant 1 : index
    %c3_182 = arith.constant 3 : index
    %c0_183 = arith.constant 0 : index
    %c0_184 = arith.constant 0 : index
    %98 = vector.load %arg0[%c1_181, %c3_182, %c0_183, %c0_184] : memref<2x6x7x2xf32, #tpu.memory_space<vmem>>, vector<1x1x6x2xf32>
    %99 = vector.shape_cast %98 : vector<1x1x6x2xf32> to vector<6x2xf32>
    %c48 = arith.constant 48 : index
    %c0_185 = arith.constant 0 : index
    %100 = vector.load %arg4[%c48, %c0_185] : memref<64x8xf32, #tpu.memory_space<vmem>>, vector<6x2xf32>
    tpu.vector_store %arg4[%c48, %c0_185], %99 {strides = array<i32>} : memref<64x8xf32, #tpu.memory_space<vmem>>, vector<6x2xf32>,
    %c1_186 = arith.constant 1 : index
    %c3_187 = arith.constant 3 : index
    %c1_188 = arith.constant 1 : index
    %c0_189 = arith.constant 0 : index
    %101 = vector.load %arg0[%c1_186, %c3_187, %c1_188, %c0_189] : memref<2x6x7x2xf32, #tpu.memory_space<vmem>>, vector<1x1x6x2xf32>
    %102 = vector.shape_cast %101 : vector<1x1x6x2xf32> to vector<6x2xf32>
    %c48_190 = arith.constant 48 : index
    %c2_191 = arith.constant 2 : index
    %103 = vector.load %arg4[%c48_190, %c2_191] : memref<64x8xf32, #tpu.memory_space<vmem>>, vector<6x2xf32>
    tpu.vector_store %arg4[%c48_190, %c2_191], %102 {strides = array<i32>} : memref<64x8xf32, #tpu.memory_space<vmem>>, vector<6x2xf32>,
    %c1_192 = arith.constant 1 : index
    %c4_193 = arith.constant 4 : index
    %c0_194 = arith.constant 0 : index
    %c0_195 = arith.constant 0 : index
    %104 = vector.load %arg0[%c1_192, %c4_193, %c0_194, %c0_195] : memref<2x6x7x2xf32, #tpu.memory_space<vmem>>, vector<1x1x6x2xf32>
    %105 = vector.shape_cast %104 : vector<1x1x6x2xf32> to vector<6x2xf32>
    %c48_196 = arith.constant 48 : index
    %c4_197 = arith.constant 4 : index
    %106 = vector.load %arg4[%c48_196, %c4_197] : memref<64x8xf32, #tpu.memory_space<vmem>>, vector<6x2xf32>
    tpu.vector_store %arg4[%c48_196, %c4_197], %105 {strides = array<i32>} : memref<64x8xf32, #tpu.memory_space<vmem>>, vector<6x2xf32>,
    %c1_198 = arith.constant 1 : index
    %c4_199 = arith.constant 4 : index
    %c1_200 = arith.constant 1 : index
    %c0_201 = arith.constant 0 : index
    %107 = vector.load %arg0[%c1_198, %c4_199, %c1_200, %c0_201] : memref<2x6x7x2xf32, #tpu.memory_space<vmem>>, vector<1x1x6x2xf32>
    %108 = vector.shape_cast %107 : vector<1x1x6x2xf32> to vector<6x2xf32>
    %c48_202 = arith.constant 48 : index
    %c6_203 = arith.constant 6 : index
    %109 = vector.load %arg4[%c48_202, %c6_203] : memref<64x8xf32, #tpu.memory_space<vmem>>, vector<6x2xf32>
    tpu.vector_store %arg4[%c48_202, %c6_203], %108 {strides = array<i32>} : memref<64x8xf32, #tpu.memory_space<vmem>>, vector<6x2xf32>,
    %c1_204 = arith.constant 1 : index
    %c4_205 = arith.constant 4 : index
    %c0_206 = arith.constant 0 : index
    %c0_207 = arith.constant 0 : index
    %110 = vector.load %arg0[%c1_204, %c4_205, %c0_206, %c0_207] : memref<2x6x7x2xf32, #tpu.memory_space<vmem>>, vector<1x1x6x2xf32>
    %111 = vector.shape_cast %110 : vector<1x1x6x2xf32> to vector<6x2xf32>
    %c54 = arith.constant 54 : index
    %c0_208 = arith.constant 0 : index
    %112 = vector.load %arg4[%c54, %c0_208] : memref<64x8xf32, #tpu.memory_space<vmem>>, vector<6x2xf32>
    tpu.vector_store %arg4[%c54, %c0_208], %111 {strides = array<i32>} : memref<64x8xf32, #tpu.memory_space<vmem>>, vector<6x2xf32>,
    %c1_209 = arith.constant 1 : index
    %c4_210 = arith.constant 4 : index
    %c1_211 = arith.constant 1 : index
    %c0_212 = arith.constant 0 : index
    %113 = vector.load %arg0[%c1_209, %c4_210, %c1_211, %c0_212] : memref<2x6x7x2xf32, #tpu.memory_space<vmem>>, vector<1x1x6x2xf32>
    %114 = vector.shape_cast %113 : vector<1x1x6x2xf32> to vector<6x2xf32>
    %c54_213 = arith.constant 54 : index
    %c2_214 = arith.constant 2 : index
    %115 = vector.load %arg4[%c54_213, %c2_214] : memref<64x8xf32, #tpu.memory_space<vmem>>, vector<6x2xf32>
    tpu.vector_store %arg4[%c54_213, %c2_214], %114 {strides = array<i32>} : memref<64x8xf32, #tpu.memory_space<vmem>>, vector<6x2xf32>,
    %c1_215 = arith.constant 1 : index
    %c5_216 = arith.constant 5 : index
    %c0_217 = arith.constant 0 : index
    %c0_218 = arith.constant 0 : index
    %116 = vector.load %arg0[%c1_215, %c5_216, %c0_217, %c0_218] : memref<2x6x7x2xf32, #tpu.memory_space<vmem>>, vector<1x1x6x2xf32>
    %117 = vector.shape_cast %116 : vector<1x1x6x2xf32> to vector<6x2xf32>
    %c54_219 = arith.constant 54 : index
    %c4_220 = arith.constant 4 : index
    %118 = vector.load %arg4[%c54_219, %c4_220] : memref<64x8xf32, #tpu.memory_space<vmem>>, vector<6x2xf32>
    tpu.vector_store %arg4[%c54_219, %c4_220], %117 {strides = array<i32>} : memref<64x8xf32, #tpu.memory_space<vmem>>, vector<6x2xf32>,
    %c1_221 = arith.constant 1 : index
    %c5_222 = arith.constant 5 : index
    %c1_223 = arith.constant 1 : index
    %c0_224 = arith.constant 0 : index
    %119 = vector.load %arg0[%c1_221, %c5_222, %c1_223, %c0_224] : memref<2x6x7x2xf32, #tpu.memory_space<vmem>>, vector<1x1x6x2xf32>
    %120 = vector.shape_cast %119 : vector<1x1x6x2xf32> to vector<6x2xf32>
    %c54_225 = arith.constant 54 : index
    %c6_226 = arith.constant 6 : index
    %121 = vector.load %arg4[%c54_225, %c6_226] : memref<64x8xf32, #tpu.memory_space<vmem>>, vector<6x2xf32>
    tpu.vector_store %arg4[%c54_225, %c6_226], %120 {strides = array<i32>} : memref<64x8xf32, #tpu.memory_space<vmem>>, vector<6x2xf32>,
    %c0_227 = arith.constant 0 : index
    %c0_228 = arith.constant 0 : index
    %122 = vector.load %arg4[%c0_227, %c0_228] : memref<64x8xf32, #tpu.memory_space<vmem>>, vector<64x8xf32>
    %c0_229 = arith.constant 0 : index
    %c0_230 = arith.constant 0 : index
    %123 = vector.load %arg1[%c0_229, %c0_230] : memref<8x128xf32, #tpu.memory_space<vmem>>, vector<8x128xf32>
    %cst_231 = arith.constant dense<0.000000e+00> : vector<64x128xf32>
    %124 = tpu.matmul %122, %123, %cst_231 {dimension_numbers = #tpu.dot_dimension_numbers<[1], [0], [0], [1], [0, 0, 1, 1], [], []>} : vector<64x8xf32>, vector<8x128xf32>, vector<64x128xf32> -> vector<64x128xf32>
    %c0_232 = arith.constant 0 : index
    %c0_233 = arith.constant 0 : index
    %125 = vector.load %arg2[%c0_232, %c0_233] : memref<1x128xf32, #tpu.memory_space<vmem>>, vector<1x128xf32>
    %126 = vector.broadcast %125 : vector<1x128xf32> to vector<64x128xf32>
    %127 = arith.addf %124, %126 : vector<64x128xf32>
    %128 = arith.mulf %127, %127 : vector<64x128xf32>
    %cst_234 = arith.constant 4.471500e-02 : f32
    %129 = vector.broadcast %cst_234 : f32 to vector<64x128xf32>
    %130 = arith.mulf %129, %128 : vector<64x128xf32>
    %cst_235 = arith.constant 1.000000e+00 : f32
    %131 = vector.broadcast %cst_235 : f32 to vector<64x128xf32>
    %132 = arith.addf %131, %130 : vector<64x128xf32>
    %133 = arith.mulf %127, %132 : vector<64x128xf32>
    %cst_236 = arith.constant 0.797884583 : f32
    %134 = vector.broadcast %cst_236 : f32 to vector<64x128xf32>
    %135 = arith.mulf %134, %133 : vector<64x128xf32>
    %136 = math.tanh %135 : vector<64x128xf32>
    %cst_237 = arith.constant 5.000000e-01 : f32
    %137 = vector.broadcast %cst_237 : f32 to vector<64x128xf32>
    %138 = arith.mulf %137, %127 : vector<64x128xf32>
    %cst_238 = arith.constant 1.000000e+00 : f32
    %139 = vector.broadcast %cst_238 : f32 to vector<64x128xf32>
    %140 = arith.addf %139, %136 : vector<64x128xf32>
    %141 = arith.mulf %138, %140 : vector<64x128xf32>
    %c0_239 = arith.constant 0 : index
    %c0_240 = arith.constant 0 : index
    %142 = vector.load %arg3[%c0_239, %c0_240] : memref<64x128xf32, #tpu.memory_space<vmem>>, vector<64x128xf32>
    tpu.vector_store %arg3[%c0_239, %c0_240], %141 {strides = array<i32>} : memref<64x128xf32, #tpu.memory_space<vmem>>, vector<64x128xf32>,
    return
  }
}

</mosaic_0001>

<llo_original>
// kernel: convt_gelu.1
$region0: #{convt_gelu.1}
  #allocation0 [shape = 'u32[]', space=smem, size = 0x4, offset = 0x4, fixed_abs, tag = 'smem constant byte address 0x4 - core index']
  #allocation1 [shape = 'u32[72,128]{1,0:T(1,128)}', space=vmem, size = 0x9000, scoped, tag = 'internal scratch']
  #allocation2 [shape = 'f32[64,8]{1,0:T(8,128)}', space=vmem, size = 0x8000, scoped, tag = 'scratch operand']
  %s0 = inlined_call_operand.vmem [shape: f32[2,6,7,2], index: 0, kind: input, shape index: {}]
  %s1 = inlined_call_operand.vmem [shape: f32[8,128], index: 1, kind: input, shape index: {}]
  %s2 = inlined_call_operand.vmem [shape: f32[1,128], index: 2, kind: input, shape index: {}]
  %s3 = inlined_call_operand.vmem [shape: f32[64,128], index: 3, kind: output, shape index: {}]
  %s4 = sld [smem:[#allocation0]]
  $region22: #{convt_gelu.1} parent=0
    _
  %s6 = ssub.s32 1, %s4
  %s7 = scalar_select 0, %s6, %s4
  // Predicated region
  $region2: #{convt_gelu.1} parent=0 // pred_check
    _
  $region3: #{convt_gelu.1} parent=0 // pred_check_branch
    %9 = sbr.rel (0) target = $region5
  $region4: #{convt_gelu.1} parent=0 // pred_region
    _
  $region5: #{convt_gelu.1} parent=0 // pred_fallthru
    _
  // Predicated region
  $region6: #{convt_gelu.1} parent=0 // pred_check
    _
  $region7: #{convt_gelu.1} parent=0 // pred_check_branch
    %11 = sbr.rel (0) target = $region9
  $region8: #{convt_gelu.1} parent=0 // pred_region
    _
  $region9: #{convt_gelu.1} parent=0 // pred_fallthru
    _
  // Predicated region
  $region10: #{convt_gelu.1} parent=0 // pred_check
    _
  $region11: #{convt_gelu.1} parent=0 // pred_check_branch
    %13 = sbr.rel (0) target = $region13
  $region12: #{convt_gelu.1} parent=0 // pred_region
    _
  $region13: #{convt_gelu.1} parent=0 // pred_fallthru
    _
  %vm14 = vcmask 64512
  %15 = vst.msk [vmem:[#allocation2] sm:$0xff] %vm14, 0.0
  %16 = vst.msk [vmem:[#allocation2 + $0x8] sm:$0xff] %vm14, 0.0
  %17 = vst.msk [vmem:[#allocation2 + $0x10] sm:$0xff] %vm14, 0.0
  %18 = vst.msk [vmem:[#allocation2 + $0x18] sm:$0xff] %vm14, 0.0
  %19 = vst.msk [vmem:[#allocation2 + $0x20] sm:$0xff] %vm14, 0.0
  %20 = vst.msk [vmem:[#allocation2 + $0x28] sm:$0xff] %vm14, 0.0
  %21 = vst.msk [vmem:[#allocation2 + $0x30] sm:$0xff] %vm14, 0.0
  %22 = vst.msk [vmem:[#allocation2 + $0x38] sm:$0xff] %vm14, 0.0
  %v23 = vld [vmem:[%s0] sm:$0x3f]
  %vm24 = vcmask 13312
  %25 = vst.msk [vmem:[#allocation2] sm:$0x3f] %vm24, %v23
  %v26 = vld [vmem:[%s0 + $0x1] sm:$0x3f]
  %28 = vrot.lane.b32.xlu0 %v26, 2
  %v29 = vpop.permute.xlu0 %28
  %vm31 = vcmask 29712
  %32 = vst.msk [vmem:[#allocation2] sm:$0x3f] %vm31, %v29
  %s33 = scalar_lea.vmem %s0, 8
  %v34 = vld [vmem:[%s33] sm:$0x3f]
  %36 = vrot.lane.b32.xlu0 %v34, 4
  %v37 = vpop.permute.xlu0 %36
  %vm39 = vcmask 46112
  %40 = vst.msk [vmem:[#allocation2] sm:$0x3f] %vm39, %v37
  %v41 = vld [vmem:[%s33 + $0x1] sm:$0x3f]
  %43 = vrot.lane.b32.xlu0 %v41, 6
  %v44 = vpop.permute.xlu0 %43
  %vm46 = vcmask 62512
  %47 = vst.msk [vmem:[#allocation2] sm:$0x3f] %vm46, %v44
  %v48 = vld [vmem:[%s33] sm:$0x3f]
  %49 = vst.msk [vmem:[#allocation2 + $0x6] sm:$0x3f] %vm24, %v48
  %v50 = vld [vmem:[%s33 + $0x1] sm:$0x3f]
  %52 = vrot.lane.b32.xlu0 %v50, 2
  %v53 = vpop.permute.xlu0 %52
  %55 = vst.msk [vmem:[#allocation2 + $0x6] sm:$0x3f] %vm31, %v53
  %s56 = scalar_lea.vmem %s0, 16
  %v57 = vld [vmem:[%s56] sm:$0x3f]
  %59 = vrot.lane.b32.xlu0 %v57, 4
  %v60 = vpop.permute.xlu0 %59
  %62 = vst.msk [vmem:[#allocation2 + $0x6] sm:$0x3f] %vm39, %v60
  %v63 = vld [vmem:[%s56 + $0x1] sm:$0x3f]
  %65 = vrot.lane.b32.xlu0 %v63, 6
  %v66 = vpop.permute.xlu0 %65
  %68 = vst.msk [vmem:[#allocation2 + $0x6] sm:$0x3f] %vm46, %v66
  %v69 = vld [vmem:[%s56] sm:$0x3f]
  %70 = vst.msk [vmem:[#allocation2 + $0xc] sm:$0x3f] %vm24, %v69
  %v71 = vld [vmem:[%s56 + $0x1] sm:$0x3f]
  %73 = vrot.lane.b32.xlu0 %v71, 2
  %v74 = vpop.permute.xlu0 %73
  %76 = vst.msk [vmem:[#allocation2 + $0xc] sm:$0x3f] %vm31, %v74
  %s77 = scalar_lea.vmem %s0, 24
  %v78 = vld [vmem:[%s77] sm:$0x3f]
  %80 = vrot.lane.b32.xlu0 %v78, 4
  %v81 = vpop.permute.xlu0 %80
  %83 = vst.msk [vmem:[#allocation2 + $0xc] sm:$0x3f] %vm39, %v81
  %v84 = vld [vmem:[%s77 + $0x1] sm:$0x3f]
  %86 = vrot.lane.b32.xlu0 %v84, 6
  %v87 = vpop.permute.xlu0 %86
  %89 = vst.msk [vmem:[#allocation2 + $0xc] sm:$0x3f] %vm46, %v87
  %v90 = vld [vmem:[%s77] sm:$0x3f]
  %91 = vst.msk [vmem:[#allocation2 + $0x12] sm:$0x3f] %vm24, %v90
  %v92 = vld [vmem:[%s77 + $0x1] sm:$0x3f]
  %94 = vrot.lane.b32.xlu0 %v92, 2
  %v95 = vpop.permute.xlu0 %94
  %97 = vst.msk [vmem:[#allocation2 + $0x12] sm:$0x3f] %vm31, %v95
  %s98 = scalar_lea.vmem %s0, 32
  %v99 = vld [vmem:[%s98] sm:$0x3f]
  %101 = vrot.lane.b32.xlu0 %v99, 4
  %v102 = vpop.permute.xlu0 %101
  %104 = vst.msk [vmem:[#allocation2 + $0x12] sm:$0x3f] %vm39, %v102
  %v105 = vld [vmem:[%s98 + $0x1] sm:$0x3f]
  %107 = vrot.lane.b32.xlu0 %v105, 6
  %v108 = vpop.permute.xlu0 %107
  %110 = vst.msk [vmem:[#allocation2 + $0x12] sm:$0x3f] %vm46, %v108
  %v111 = vld [vmem:[%s98] sm:$0x3f]
  %112 = vst.msk [vmem:[#allocation2 + $0x18] sm:$0x3f] %vm24, %v111
  %v113 = vld [vmem:[%s98 + $0x1] sm:$0x3f]
  %115 = vrot.lane.b32.xlu0 %v113, 2
  %v116 = vpop.permute.xlu0 %115
  %118 = vst.msk [vmem:[#allocation2 + $0x18] sm:$0x3f] %vm31, %v116
  %s119 = scalar_lea.vmem %s0, 40
  %v120 = vld [vmem:[%s119] sm:$0x3f]
  %122 = vrot.lane.b32.xlu0 %v120, 4
  %v123 = vpop.permute.xlu0 %122
  %125 = vst.msk [vmem:[#allocation2 + $0x18] sm:$0x3f] %vm39, %v123
  %v126 = vld [vmem:[%s119 + $0x1] sm:$0x3f]
  %128 = vrot.lane.b32.xlu0 %v126, 6
  %v129 = vpop.permute.xlu0 %128
  %131 = vst.msk [vmem:[#allocation2 + $0x18] sm:$0x3f] %vm46, %v129
  %s132 = scalar_lea.vmem %s0, 48
  %v133 = vld [vmem:[%s132] sm:$0x3f]
  %134 = vst.msk [vmem:[#allocation2 + $0x1e] sm:$0x3f] %vm24, %v133
  %v135 = vld [vmem:[%s132 + $0x1] sm:$0x3f]
  %137 = vrot.lane.b32.xlu0 %v135, 2
  %v138 = vpop.permute.xlu0 %137
  %140 = vst.msk [vmem:[#allocation2 + $0x1e] sm:$0x3f] %vm31, %v138
  %s141 = scalar_lea.vmem %s0, 56
  %v142 = vld [vmem:[%s141] sm:$0x3f]
  %144 = vrot.lane.b32.xlu0 %v142, 4
  %v145 = vpop.permute.xlu0 %144
  %147 = vst.msk [vmem:[#allocation2 + $0x1e] sm:$0x3f] %vm39, %v145
  %v148 = vld [vmem:[%s141 + $0x1] sm:$0x3f]
  %150 = vrot.lane.b32.xlu0 %v148, 6
  %v151 = vpop.permute.xlu0 %150
  %153 = vst.msk [vmem:[#allocation2 + $0x1e] sm:$0x3f] %vm46, %v151
  %v154 = vld [vmem:[%s141] sm:$0x3f]
  %155 = vst.msk [vmem:[#allocation2 + $0x24] sm:$0x3f] %vm24, %v154
  %v156 = vld [vmem:[%s141 + $0x1] sm:$0x3f]
  %158 = vrot.lane.b32.xlu0 %v156, 2
  %v159 = vpop.permute.xlu0 %158
  %161 = vst.msk [vmem:[#allocation2 + $0x24] sm:$0x3f] %vm31, %v159
  %s162 = scalar_lea.vmem %s0, 64
  %v163 = vld [vmem:[%s162] sm:$0x3f]
  %165 = vrot.lane.b32.xlu0 %v163, 4
  %v166 = vpop.permute.xlu0 %165
  %168 = vst.msk [vmem:[#allocation2 + $0x24] sm:$0x3f] %vm39, %v166
  %v169 = vld [vmem:[%s162 + $0x1] sm:$0x3f]
  %171 = vrot.lane.b32.xlu0 %v169, 6
  %v172 = vpop.permute.xlu0 %171
  %174 = vst.msk [vmem:[#allocation2 + $0x24] sm:$0x3f] %vm46, %v172
  %v175 = vld [vmem:[%s162] sm:$0x3f]
  %176 = vst.msk [vmem:[#allocation2 + $0x2a] sm:$0x3f] %vm24, %v175
  %v177 = vld [vmem:[%s162 + $0x1] sm:$0x3f]
  %179 = vrot.lane.b32.xlu0 %v177, 2
  %v180 = vpop.permute.xlu0 %179
  %182 = vst.msk [vmem:[#allocation2 + $0x2a] sm:$0x3f] %vm31, %v180
  %s183 = scalar_lea.vmem %s0, 72
  %v184 = vld [vmem:[%s183] sm:$0x3f]
  %186 = vrot.lane.b32.xlu0 %v184, 4
  %v187 = vpop.permute.xlu0 %186
  %189 = vst.msk [vmem:[#allocation2 + $0x2a] sm:$0x3f] %vm39, %v187
  %v190 = vld [vmem:[%s183 + $0x1] sm:$0x3f]
  %192 = vrot.lane.b32.xlu0 %v190, 6
  %v193 = vpop.permute.xlu0 %192
  %195 = vst.msk [vmem:[#allocation2 + $0x2a] sm:$0x3f] %vm46, %v193
  %v196 = vld [vmem:[%s183] sm:$0x3f]
  %197 = vst.msk [vmem:[#allocation2 + $0x30] sm:$0x3f] %vm24, %v196
  %v198 = vld [vmem:[%s183 + $0x1] sm:$0x3f]
  %200 = vrot.lane.b32.xlu0 %v198, 2
  %v201 = vpop.permute.xlu0 %200
  %203 = vst.msk [vmem:[#allocation2 + $0x30] sm:$0x3f] %vm31, %v201
  %s204 = scalar_lea.vmem %s0, 80
  %v205 = vld [vmem:[%s204] sm:$0x3f]
  %207 = vrot.lane.b32.xlu0 %v205, 4
  %v208 = vpop.permute.xlu0 %207
  %210 = vst.msk [vmem:[#allocation2 + $0x30] sm:$0x3f] %vm39, %v208
  %v211 = vld [vmem:[%s204 + $0x1] sm:$0x3f]
  %213 = vrot.lane.b32.xlu0 %v211, 6
  %v214 = vpop.permute.xlu0 %213
  %216 = vst.msk [vmem:[#allocation2 + $0x30] sm:$0x3f] %vm46, %v214
  %v217 = vld [vmem:[%s204] sm:$0x3f]
  %218 = vst.msk [vmem:[#allocation2 + $0x36] sm:$0x3f] %vm24, %v217
  %v219 = vld [vmem:[%s204 + $0x1] sm:$0x3f]
  %221 = vrot.lane.b32.xlu0 %v219, 2
  %v222 = vpop.permute.xlu0 %221
  %224 = vst.msk [vmem:[#allocation2 + $0x36] sm:$0x3f] %vm31, %v222
  %s225 = scalar_lea.vmem %s0, 88
  %v226 = vld [vmem:[%s225] sm:$0x3f]
  %228 = vrot.lane.b32.xlu0 %v226, 4
  %v229 = vpop.permute.xlu0 %228
  %231 = vst.msk [vmem:[#allocation2 + $0x36] sm:$0x3f] %vm39, %v229
  %v232 = vld [vmem:[%s225 + $0x1] sm:$0x3f]
  %234 = vrot.lane.b32.xlu0 %v232, 6
  %v235 = vpop.permute.xlu0 %234
  %237 = vst.msk [vmem:[#allocation2 + $0x36] sm:$0x3f] %vm46, %v235
  %v238 = vld [vmem:[#allocation2] sm:$0xff]
  %v239 = vld [vmem:[#allocation2 + $0x8] sm:$0xff]
  %v240 = vld [vmem:[#allocation2 + $0x10] sm:$0xff]
  %v241 = vld [vmem:[#allocation2 + $0x18] sm:$0xff]
  %v242 = vld [vmem:[#allocation2 + $0x20] sm:$0xff]
  %v243 = vld [vmem:[#allocation2 + $0x28] sm:$0xff]
  %v244 = vld [vmem:[#allocation2 + $0x30] sm:$0xff]
  %v245 = vld [vmem:[#allocation2 + $0x38] sm:$0xff]
  %v246 = vld [vmem:[%s1] sm:$0xff]
  %v247 = vld [vmem:[%s2] sm:$0x1]
  %v249 = vperm.slane %v247, 0
  %v252 = vsel %vm14, %v238, 0
  %v255 = vsel %vm14, %v239, 0
  %v258 = vsel %vm14, %v240, 0
  %v261 = vsel %vm14, %v241, 0
  %v264 = vsel %vm14, %v242, 0
  %v267 = vsel %vm14, %v243, 0
  %v270 = vsel %vm14, %v244, 0
  %v273 = vsel %vm14, %v245, 0
  %275 = vmatpush.msra.mxu0 0.0
  %276 = vmatpush.msra.mxu0 0.0
  %277 = vmatpush.msra.mxu0 0.0
  %278 = vmatpush.msra.mxu0 0.0
  %279 = vmatpush.msra.mxu0 0.0
  %280 = vmatpush.msra.mxu0 0.0
  %281 = vmatpush.msra.mxu0 0.0
  %282 = vmatpush.msra.mxu0 0.0
  %283 = vmatpush.msra.mxu0 0.0
  %284 = vmatpush.msra.mxu0 0.0
  %285 = vmatpush.msra.mxu0 0.0
  %286 = vmatpush.msra.mxu0 0.0
  %287 = vmatpush.msra.mxu0 0.0
  %288 = vmatpush.msra.mxu0 0.0
  %289 = vmatpush.msra.mxu0 0.0
  %290 = vmatpush.msra.mxu0 %v246
  %291 = vmatmul.f32.gmra.mxu0 %v252
  %v292 = vpop.f32.mrf.mxu0
  %v293 = vadd.f32 %v249, %v292
  %294 = vmatmul.f32.gmra.mxu0 %v255
  %v295 = vpop.f32.mrf.mxu0
  %v296 = vadd.f32 %v249, %v295
  %297 = vmatmul.f32.gmra.mxu0 %v258
  %v298 = vpop.f32.mrf.mxu0
  %v299 = vadd.f32 %v249, %v298
  %300 = vmatmul.f32.gmra.mxu0 %v261
  %v301 = vpop.f32.mrf.mxu0
  %v302 = vadd.f32 %v249, %v301
  %303 = vmatmul.f32.gmra.mxu0 %v264
  %v304 = vpop.f32.mrf.mxu0
  %v305 = vadd.f32 %v249, %v304
  %306 = vmatmul.f32.gmra.mxu0 %v267
  %v307 = vpop.f32.mrf.mxu0
  %v308 = vadd.f32 %v249, %v307
  %309 = vmatmul.f32.gmra.mxu0 %v270
  %v310 = vpop.f32.mrf.mxu0
  %v311 = vadd.f32 %v249, %v310
  %312 = vmatmul.f32.gmra.mxu0 %v273
  %v313 = vpop.f32.mrf.mxu0
  %v314 = vadd.f32 %v249, %v313
  %315 = vdwg.mxu0
  %v316 = vmul.f32 %v293, %v293
  %v317 = vmul.f32 %v296, %v296
  %v318 = vmul.f32 %v299, %v299
  %v319 = vmul.f32 %v302, %v302
  %v320 = vmul.f32 %v305, %v305
  %v321 = vmul.f32 %v308, %v308
  %v322 = vmul.f32 %v311, %v311
  %v323 = vmul.f32 %v314, %v314
  %v324 = vmul.f32 %v316, 0.044715
  %v325 = vmul.f32 %v317, 0.044715
  %v326 = vmul.f32 %v318, 0.044715
  %v327 = vmul.f32 %v319, 0.044715
  %v328 = vmul.f32 %v320, 0.044715
  %v329 = vmul.f32 %v321, 0.044715
  %v330 = vmul.f32 %v322, 0.044715
  %v331 = vmul.f32 %v323, 0.044715
  %v332 = vadd.f32 %v324, 1.0
  %v333 = vadd.f32 %v325, 1.0
  %v334 = vadd.f32 %v326, 1.0
  %v335 = vadd.f32 %v327, 1.0
  %v336 = vadd.f32 %v328, 1.0
  %v337 = vadd.f32 %v329, 1.0
  %v338 = vadd.f32 %v330, 1.0
  %v339 = vadd.f32 %v331, 1.0
  %v340 = vmul.f32 %v293, %v332
  %v341 = vmul.f32 %v296, %v333
  %v342 = vmul.f32 %v299, %v334
  %v343 = vmul.f32 %v302, %v335
  %v344 = vmul.f32 %v305, %v336
  %v345 = vmul.f32 %v308, %v337
  %v346 = vmul.f32 %v311, %v338
  %v347 = vmul.f32 %v314, %v339
  %v348 = vmul.f32 %v340, 0.7978846
  %v349 = vmul.f32 %v341, 0.7978846
  %v350 = vmul.f32 %v342, 0.7978846
  %v351 = vmul.f32 %v343, 0.7978846
  %v352 = vmul.f32 %v344, 0.7978846
  %v353 = vmul.f32 %v345, 0.7978846
  %v354 = vmul.f32 %v346, 0.7978846
  %v355 = vmul.f32 %v347, 0.7978846
  %v356 = vtanh.pop %v348
  %v357 = vtanh.pop %v349
  %v358 = vtanh.pop %v350
  %v359 = vtanh.pop %v351
  %v360 = vtanh.pop %v352
  %v361 = vtanh.pop %v353
  %v362 = vtanh.pop %v354
  %v363 = vtanh.pop %v355
  %v364 = vmul.f32 %v293, 0.5
  %v365 = vmul.f32 %v296, 0.5
  %v366 = vmul.f32 %v299, 0.5
  %v367 = vmul.f32 %v302, 0.5
  %v368 = vmul.f32 %v305, 0.5
  %v369 = vmul.f32 %v308, 0.5
  %v370 = vmul.f32 %v311, 0.5
  %v371 = vmul.f32 %v314, 0.5
  %v372 = vadd.f32 %v356, 1.0
  %v373 = vadd.f32 %v357, 1.0
  %v374 = vadd.f32 %v358, 1.0
  %v375 = vadd.f32 %v359, 1.0
  %v376 = vadd.f32 %v360, 1.0
  %v377 = vadd.f32 %v361, 1.0
  %v378 = vadd.f32 %v362, 1.0
  %v379 = vadd.f32 %v363, 1.0
  %v380 = vmul.f32 %v364, %v372
  %v381 = vmul.f32 %v365, %v373
  %v382 = vmul.f32 %v366, %v374
  %v383 = vmul.f32 %v367, %v375
  %v384 = vmul.f32 %v368, %v376
  %v385 = vmul.f32 %v369, %v377
  %v386 = vmul.f32 %v370, %v378
  %v387 = vmul.f32 %v371, %v379
  %388 = vst [vmem:[%s3] sm:$0xff] %v380
  %389 = vst [vmem:[%s3 + $0x8] sm:$0xff] %v381
  %390 = vst [vmem:[%s3 + $0x10] sm:$0xff] %v382
  %391 = vst [vmem:[%s3 + $0x18] sm:$0xff] %v383
  %392 = vst [vmem:[%s3 + $0x20] sm:$0xff] %v384
  %393 = vst [vmem:[%s3 + $0x28] sm:$0xff] %v385
  %394 = vst [vmem:[%s3 + $0x30] sm:$0xff] %v386
  %395 = vst [vmem:[%s3 + $0x38] sm:$0xff] %v387
  // Predicated region
  $region14: #{convt_gelu.1} parent=0 // pred_check
    _
  $region15: #{convt_gelu.1} parent=0 // pred_check_branch
    %397 = sbr.rel (0) target = $region17
  $region16: #{convt_gelu.1} parent=0 // pred_region
    _
  $region17: #{convt_gelu.1} parent=0 // pred_fallthru
    _
  // Predicated region
  $region18: #{convt_gelu.1} parent=0 // pred_check
    _
  $region19: #{convt_gelu.1} parent=0 // pred_check_branch
    %399 = sbr.rel (0) target = $region21
  $region20: #{convt_gelu.1} parent=0 // pred_region
    _
  $region21: #{convt_gelu.1} parent=0 // pred_fallthru
    _

</llo_original>
